<compile_context>
chip_gen: v6e
topology: v6e:2x2x1
jax: 0.10.0
libtpu: 0.0.40
codegen_flags: <defaults>
</compile_context>

<pallas_src>
import math
from functools import lru_cache

import numpy as np

import jax
import jax.numpy as jnp
from jax.experimental import pallas as pl
from jax.experimental.pallas import tpu as pltpu

_IN_EPS = 1e-5
_LEAKY_SLOPE = 0.2


# ----------------------------------------------------------------------------
# tile-size / chip helpers
# ----------------------------------------------------------------------------
def _round_up(x, m):
    return ((x + m - 1) // m) * m


def _pick_div(dim, cap, unit):
    """Largest divisor of `dim` that is a multiple of `unit` and <= cap,
    else `dim` itself (full dim is always a legal block extent)."""
    t = (cap // unit) * unit
    while t >= unit:
        if dim % t == 0:
            return t
        t -= unit
    return dim


def _pick_matmul_tile(dim, cap, unit):
    t = _pick_div(dim, cap, unit)
    if t == dim and dim > 4 * cap:
        # genuinely ragged *large* dim: caller pads (never hit by this network).
        return (cap // unit) * unit
    return t


@lru_cache(maxsize=1)
def _chip_config():
    """Per-generation tile caps and VMEM budgets."""
    try:
        kind = jax.devices()[0].device_kind.lower()
    except Exception:  # pragma: no cover
        kind = ""
    mib = 1024 * 1024
    if "v7" in kind or "7x" in kind:
        # 64 MiB VMEM, 2x256^2 MXU
        return dict(tm=512, tn=512, tk=512,
                    mm_vmem=48 * mib, big_vmem=48 * mib,
                    in_onepass=4 * mib, direct_budget=24 * mib)
    if any(("v%d" % v) in kind for v in (2, 3, 4, 5)):
        # 4x128^2 MXU generations: native tn=128, big tm for operand reuse
        return dict(tm=512, tn=128, tk=512,
                    mm_vmem=64 * mib, big_vmem=64 * mib,
                    in_onepass=8 * mib, direct_budget=40 * mib)
    # v6e default: 128 MiB VMEM, 2x256^2 MXU
    return dict(tm=512, tn=512, tk=512,
                mm_vmem=64 * mib, big_vmem=64 * mib,
                in_onepass=8 * mib, direct_budget=40 * mib)


# ----------------------------------------------------------------------------
# Pallas matmul with fused pre-activation, bias and post-activation
# (used by every im2col convolution)
# ----------------------------------------------------------------------------
def _apply_pre(a, pre_act):
    if pre_act == "leaky_relu":
        # valid on zero-padded patches since leaky(0) == 0
        return jnp.where(a >= 0, a, _LEAKY_SLOPE * a)
    return a


def _apply_post(r, post_act):
    if post_act == "tanh":
        return jnp.tanh(r)
    if post_act == "relu":
        return jnp.maximum(r, 0.0)
    return r


def _mm_kernel_single(pre_act, post_act):
    def kernel(a_ref, b_ref, bias_ref, o_ref):
        a = _apply_pre(a_ref[...], pre_act)
        r = jnp.dot(a, b_ref[...], preferred_element_type=jnp.float32)
        r = _apply_post(r + bias_ref[...], post_act)
        o_ref[...] = r.astype(o_ref.dtype)
    return kernel


def _mm_kernel_multi(pre_act, post_act):
    def kernel(a_ref, b_ref, bias_ref, o_ref, acc_ref):
        k = pl.program_id(2)

        @pl.when(k == 0)
        def _():
            acc_ref[...] = jnp.zeros_like(acc_ref)

        a = _apply_pre(a_ref[...], pre_act)
        acc_ref[...] += jnp.dot(a, b_ref[...],
                                preferred_element_type=jnp.float32)

        @pl.when(k == pl.num_programs(2) - 1)
        def _():
            r = _apply_post(acc_ref[...] + bias_ref[...], post_act)
            o_ref[...] = r.astype(o_ref.dtype)
    return kernel


def matmul_bias_act(a, b, bias, *, pre_act=None, post_act=None,
                    out_dtype=jnp.float32):
    """out = post_act(pre_act(A) @ B + bias).  A:(M,K)  B:(K,N)  bias:(N,)."""
    cfg = _chip_config()
    M, K = a.shape
    K2, N = b.shape
    assert K == K2
    m_unit = 16 if a.dtype == jnp.bfloat16 else 8
    Np = _round_up(N, 128)                      # lane-dense output stores
    tm = _pick_matmul_tile(M, cfg["tm"], m_unit)
    tn = _pick_matmul_tile(Np, cfg["tn"], 128)
    tk = _pick_matmul_tile(K, cfg["tk"], 128)

    Mp = M if M % tm == 0 else _round_up(M, tm)
    Kp = K if K % tk == 0 else _round_up(K, tk)
    if (Mp, Kp) != (M, K):
        a = jnp.pad(a, ((0, Mp - M), (0, Kp - K)))
    if (Kp, Np) != (K, N):
        b = jnp.pad(b, ((0, Kp - K), (0, Np - N)))
    bias2 = bias.reshape(1, N).astype(jnp.float32)
    if Np != N:
        bias2 = jnp.pad(bias2, ((0, 0), (0, Np - N)))

    single_k = (Kp // tk) == 1
    kernel = (_mm_kernel_single(pre_act, post_act) if single_k
              else _mm_kernel_multi(pre_act, post_act))
    scratch = [] if single_k else [pltpu.VMEM((tm, tn), jnp.float32)]

    out = pl.pallas_call(
        kernel,
        out_shape=jax.ShapeDtypeStruct((Mp, Np), out_dtype),
        grid_spec=pltpu.PrefetchScalarGridSpec(
            num_scalar_prefetch=0,
            grid=(Mp // tm, Np // tn, Kp // tk),
            in_specs=[
                pl.BlockSpec((tm, tk), lambda i, j, k: (i, k)),
                pl.BlockSpec((tk, tn), lambda i, j, k: (k, j)),
                # k-independent -> bias DMA fetched once per (i, j) tile
                pl.BlockSpec((1, tn), lambda i, j, k: (0, j)),
            ],
            out_specs=pl.BlockSpec((tm, tn), lambda i, j, k: (i, j)),
            scratch_shapes=scratch),
        compiler_params=pltpu.CompilerParams(
            dimension_semantics=("parallel", "parallel", "arbitrary"),
            vmem_limit_bytes=cfg["mm_vmem"]),
    )(a, b, bias2)
    if (Mp, Np) != (M, N):
        out = out[:M, :N]
    return out


# ----------------------------------------------------------------------------
# Conv2d (NHWC): direct 3x3/s1 kernel (no im2col) + im2col fallback
# ----------------------------------------------------------------------------
def _direct3x3_kernel_factory(H, W, multi_k, pre_act, post_act):
    def epilogue(r, bias_ref, o_ref):
        r = _apply_post(r + bias_ref[...], post_act)
        o_ref[...] = r.reshape(H, W, -1).astype(o_ref.dtype)

    def tap_accumulate(x_refs, w_ref):
        s = None
        for kx in range(3):
            xcol = x_refs[kx]
            for ky in range(3):
                a = xcol[ky:ky + H, :, :]            # (H, W, ck) aligned slice
                a = _apply_pre(a, pre_act)
                a = a.reshape(H * W, a.shape[-1])
                d = jnp.dot(a, w_ref[ky * 3 + kx],
                            preferred_element_type=jnp.float32)
                s = d if s is None else s + d
        return s

    if multi_k:
        def kernel(x0, x1, x2, w_ref, bias_ref, o_ref, acc_ref):
            k = pl.program_id(2)

            @pl.when(k == 0)
            def _():
                acc_ref[...] = jnp.zeros_like(acc_ref)

            acc_ref[...] += tap_accumulate((x0, x1, x2), w_ref)

            @pl.when(k == pl.num_programs(2) - 1)
            def _():
                epilogue(acc_ref[...], bias_ref, o_ref)
        return kernel

    def kernel(x0, x1, x2, w_ref, bias_ref, o_ref):
        epilogue(tap_accumulate((x0, x1, x2), w_ref), bias_ref, o_ref)
    return kernel


def _direct3x3_fits(H, W, Cin, Cout, compute_dtype, out_dtype, cfg):
    Np = _round_up(Cout, 128)
    ck = _pick_div(Cin, 512, 128)
    tn = _pick_div(Np, cfg["tn"], 128)
    csz = np.dtype(compute_dtype).itemsize
    osz = np.dtype(out_dtype).itemsize
    need = (2 * 3 * (H + 2) * W * ck * csz      # three shifted inputs (dbl buf)
            + 2 * 9 * ck * tn * csz             # weights
            + 2 * H * W * tn * osz              # output
            + 2 * H * W * tn * 4)               # f32 accumulation
    return need <= cfg["direct_budget"]


def _conv_direct_3x3(x, w, b, *, pre_act, post_act, compute_dtype, out_dtype,
                     cfg):
    N, H, W, Cin = x.shape
    Cout = w.shape[0]
    xp = jnp.pad(x, ((0, 0), (1, 1), (1, 1), (0, 0))).astype(compute_dtype)
    # Three W-shifted copies so only aligned (major-dim) slices remain in-kernel.
    # TODO(synk): fold the W shift in-kernel (pltpu.roll / halo tiling) to drop
    # the remaining 3x input read amplification.
    xs = [xp[:, :, kx:kx + W, :] for kx in range(3)]
    wt = jnp.transpose(w, (2, 3, 1, 0)).reshape(9, Cin, Cout).astype(compute_dtype)
    bias2 = b.reshape(1, Cout).astype(jnp.float32)
    Np = _round_up(Cout, 128)                   # lane-dense output stores
    if Np != Cout:
        wt = jnp.pad(wt, ((0, 0), (0, 0), (0, Np - Cout)))
        bias2 = jnp.pad(bias2, ((0, 0), (0, Np - Cout)))

    ck = _pick_div(Cin, 512, 128)
    tn = _pick_div(Np, cfg["tn"], 128)
    kg = Cin // ck
    kernel = _direct3x3_kernel_factory(H, W, kg > 1, pre_act, post_act)
    scratch = [pltpu.VMEM((H * W, tn), jnp.float32)] if kg > 1 else []
    x_specs = [pl.BlockSpec((None, H + 2, W, ck), lambda n, j, k: (n, 0, 0, k))
               for _ in range(3)]

    out = pl.pallas_call(
        kernel,
        out_shape=jax.ShapeDtypeStruct((N, H, W, Np), out_dtype),
        grid=(N, Np // tn, kg),
        in_specs=x_specs + [
            pl.BlockSpec((9, ck, tn), lambda n, j, k: (0, k, j)),
            pl.BlockSpec((1, tn), lambda n, j, k: (0, j)),
        ],
        out_specs=pl.BlockSpec((None, H, W, tn), lambda n, j, k: (n, 0, 0, j)),
        scratch_shapes=scratch,
        compiler_params=pltpu.CompilerParams(
            dimension_semantics=("parallel", "parallel", "arbitrary"),
            vmem_limit_bytes=cfg["mm_vmem"]),
    )(*xs, wt, bias2)
    if Np != Cout:
        out = out[..., :Cout]
    return out


def _conv_im2col(x, w, b, *, stride, padding, pre_act, post_act,
                 compute_dtype, out_dtype):
    N, H, W, Cin = x.shape
    Cout, _, kh, kw = w.shape
    Ho = (H + 2 * padding - kh) // stride + 1
    Wo = (W + 2 * padding - kw) // stride + 1
    xp = jnp.pad(x, ((0, 0), (padding, padding), (padding, padding), (0, 0)))
    patches = []
    for ky in range(kh):
        for kx in range(kw):
            patches.append(
                xp[:, ky:ky + stride * Ho:stride, kx:kx + stride * Wo:stride, :])
    pmat = jnp.concatenate(patches, axis=-1).reshape(N * Ho * Wo, kh * kw * Cin)
    wmat = jnp.transpose(w, (2, 3, 1, 0)).reshape(kh * kw * Cin, Cout)
    pmat = pmat.astype(compute_dtype)
    wmat = wmat.astype(compute_dtype)
    out = matmul_bias_act(pmat, wmat, b, pre_act=pre_act, post_act=post_act,
                          out_dtype=out_dtype)
    return out.reshape(N, Ho, Wo, Cout)


def conv2d(x, w, b, *, stride, padding, pre_act=None, post_act=None,
           compute_dtype=jnp.bfloat16, out_dtype=jnp.bfloat16):
    """x:(N,H,W,Cin)  w:(Cout,Cin,kh,kw) (PyTorch layout)  b:(Cout,)."""
    cfg = _chip_config()
    N, H, W, Cin = x.shape
    Cout, _, kh, kw = w.shape
    if (stride == 1 and kh == 3 and kw == 3 and padding == 1 and W % 8 == 0
            and _direct3x3_fits(H, W, Cin, Cout, compute_dtype, out_dtype, cfg)):
        return _conv_direct_3x3(x, w, b, pre_act=pre_act, post_act=post_act,
                                compute_dtype=compute_dtype,
                                out_dtype=out_dtype, cfg=cfg)
    # TODO(synk): the stride-2 k4 down-convs still materialize im2col (16x);
    # a space-to-depth direct kernel is the remaining HBM-traffic item.
    return _conv_im2col(x, w, b, stride=stride, padding=padding,
                        pre_act=pre_act, post_act=post_act,
                        compute_dtype=compute_dtype, out_dtype=out_dtype)


# ----------------------------------------------------------------------------
# Bilinear 2x upsample (align_corners=True), single fused kernel
# ----------------------------------------------------------------------------
def _bilinear_taps(n_in, n_out):
    lo, hi, fr = [], [], []
    for i in range(n_out):
        if n_in == 1:
            lo.append(0); hi.append(0); fr.append(0.0)
            continue
        src = i * (n_in - 1) / (n_out - 1)          # align_corners=True
        l = min(max(int(math.floor(src)), 0), n_in - 1)
        h = min(l + 1, n_in - 1)
        lo.append(l); hi.append(h); fr.append(float(src - l))
    return lo, hi, fr


def _interp_matrix(n_in, n_out):
    m = np.zeros((n_out, n_in), dtype=np.float32)
    lo, hi, fr = _bilinear_taps(n_in, n_out)
    for j in range(n_out):
        if hi[j] == lo[j] or fr[j] == 0.0:
            m[j, lo[j]] = 1.0
        else:
            m[j, lo[j]] = 1.0 - fr[j]
            m[j, hi[j]] = fr[j]
    return m


def _make_upsample_kernel(H, W, Wo, tho, pre_relu, use_mm):
    taps_w = None if use_mm else _bilinear_taps(W, Wo)
    inv = 1.0 / float(2 * H - 1)

    def kernel(x_ref, mw_ref, o_ref):
        base = pl.program_id(2) * tho
        mw = mw_ref[...] if use_mm else None

        def body(i, carry):
            o = base + i
            num = o * (H - 1)
            l = num // (2 * H - 1)
            f = num.astype(jnp.float32) * inv - l.astype(jnp.float32)
            h2 = jnp.minimum(l + 1, H - 1)
            rl = x_ref[l]                       # (W, ct)
            rh = x_ref[h2]
            if pre_relu:                        # fused preceding ReLU
                rl = jnp.maximum(rl, 0)
                rh = jnp.maximum(rh, 0)
            rl = rl.astype(jnp.float32)
            rh = rh.astype(jnp.float32)
            row = rl + f * (rh - rl)            # H-interpolated row
            if use_mm:
                out_row = jnp.dot(mw, row, preferred_element_type=jnp.float32)
            else:
                pieces = []
                lo, hi, fr = taps_w
                for j in range(Wo):
                    a = row[lo[j]:lo[j] + 1, :]
                    if hi[j] == lo[j] or fr[j] == 0.0:
                        v = a
                    else:
                        v = (1.0 - fr[j]) * a + fr[j] * row[hi[j]:hi[j] + 1, :]
                    pieces.append(v)
                out_row = jnp.concatenate(pieces, axis=0)   # (Wo, ct), dense
            o_ref[i] = out_row.astype(o_ref.dtype)
            return carry

        jax.lax.fori_loop(0, tho, body, 0)

    return kernel


def upsample_bilinear_2x(x, pre_relu=False):
    """NHWC 2x bilinear upsample matching nn.Upsample(2,'bilinear',
    align_corners=True); optionally fuses the preceding ReLU.  Single kernel:
    the (N,2H,W,C) intermediate never touches HBM."""
    cfg = _chip_config()
    N, H, W, C = x.shape
    Ho, Wo = 2 * H, 2 * W
    ct = _pick_div(C, 128, 128)
    tho = _pick_div(Ho, 64, 8)
    use_mm = W >= 32                            # MXU W-interp for wide rows
    mw = jnp.asarray(_interp_matrix(W, Wo))
    kernel = _make_upsample_kernel(H, W, Wo, tho, pre_relu, use_mm)
    # TODO(synk): halo-tile the H axis for very large spatial extents so the
    # full-H input block stays within VMEM on v7x.
    return pl.pallas_call(
        kernel,
        out_shape=jax.ShapeDtypeStruct((N, Ho, Wo, C), x.dtype),
        grid=(N, C // ct, Ho // tho),
        in_specs=[pl.BlockSpec((None, H, W, ct), lambda n, c, r: (n, 0, 0, c)),
                  pl.BlockSpec((Wo, W), lambda n, c, r: (0, 0))],
        out_specs=pl.BlockSpec((None, tho, Wo, ct),
                               lambda n, c, r: (n, r, 0, c)),
        compiler_params=pltpu.CompilerParams(
            dimension_semantics=("parallel", "parallel", "arbitrary"),
            vmem_limit_bytes=cfg["big_vmem"]),
    )(x, mw)


# ----------------------------------------------------------------------------
# InstanceNorm2d (affine=False, eps=1e-5, biased variance), channel-tiled,
# bf16 I/O with f32 stats
# ----------------------------------------------------------------------------
def _in_onepass_kernel(x_ref, o_ref):
    x = x_ref[0].astype(jnp.float32)                 # (HW, ct)
    mean = jnp.mean(x, axis=0, keepdims=True)
    var = jnp.mean(jnp.square(x - mean), axis=0, keepdims=True)
    o_ref[0] = ((x - mean) * jax.lax.rsqrt(var + _IN_EPS)).astype(o_ref.dtype)


def _make_in_stats_kernel(hw_total):
    inv = 1.0 / float(hw_total)

    def kernel(x_ref, mean_ref, rstd_ref, sum_ref, sq_ref):
        t = pl.program_id(2)

        @pl.when(t == 0)
        def _():
            sum_ref[...] = jnp.zeros_like(sum_ref)
            sq_ref[...] = jnp.zeros_like(sq_ref)

        x = x_ref[0].astype(jnp.float32)             # (hwt, ct)
        sum_ref[...] += jnp.sum(x, axis=0, keepdims=True)
        sq_ref[...] += jnp.sum(x * x, axis=0, keepdims=True)

        @pl.when(t == pl.num_programs(2) - 1)
        def _():
            m = sum_ref[...] * inv
            # TODO(synk): switch to centered-variance / Welford if cancellation
            # shows up at very large H*W with bf16 activations.
            v = sq_ref[...] * inv - m * m
            mean_ref[0] = m
            rstd_ref[0] = jax.lax.rsqrt(jnp.maximum(v, 0.0) + _IN_EPS)

    return kernel


def _in_apply_kernel(x_ref, mean_ref, rstd_ref, o_ref):
    o_ref[0] = ((x_ref[0].astype(jnp.float32) - mean_ref[0])
                * rstd_ref[0]).astype(o_ref.dtype)


def instance_norm(x):
    """x: NHWC, normalize over (H, W) per sample and channel."""
    cfg = _chip_config()
    N, H, W, C = x.shape
    HW = H * W
    xr = x.reshape(N, HW, C)
    ct = _pick_div(C, 256, 128)

    if HW * ct * 4 <= cfg["in_onepass"]:
        # one pass (2x HBM traffic), tiled over channels
        y = pl.pallas_call(
            _in_onepass_kernel,
            out_shape=jax.ShapeDtypeStruct((N, HW, C), x.dtype),
            grid=(N, C // ct),
            in_specs=[pl.BlockSpec((1, HW, ct), lambda n, c: (n, 0, c))],
            out_specs=pl.BlockSpec((1, HW, ct), lambda n, c: (n, 0, c)),
            compiler_params=pltpu.CompilerParams(
                dimension_semantics=("parallel", "parallel"),
                vmem_limit_bytes=cfg["big_vmem"]),
        )(xr)
    else:
        # very large H*W: two-pass (sum / sum-of-squares, then normalize)
        hwt = _pick_div(HW, 4096, 8)
        mean, rstd = pl.pallas_call(
            _make_in_stats_kernel(HW),
            out_shape=(jax.ShapeDtypeStruct((N, 1, C), jnp.float32),
                       jax.ShapeDtypeStruct((N, 1, C), jnp.float32)),
            grid=(N, C // ct, HW // hwt),
            in_specs=[pl.BlockSpec((1, hwt, ct), lambda n, c, t: (n, t, c))],
            out_specs=(pl.BlockSpec((1, 1, ct), lambda n, c, t: (n, 0, c)),
                       pl.BlockSpec((1, 1, ct), lambda n, c, t: (n, 0, c))),
            scratch_shapes=[pltpu.VMEM((1, ct), jnp.float32),
                            pltpu.VMEM((1, ct), jnp.float32)],
            compiler_params=pltpu.CompilerParams(
                dimension_semantics=("parallel", "parallel", "arbitrary"),
                vmem_limit_bytes=cfg["big_vmem"]),
        )(xr)
        y = pl.pallas_call(
            _in_apply_kernel,
            out_shape=jax.ShapeDtypeStruct((N, HW, C), x.dtype),
            grid=(N, C // ct, HW // hwt),
            in_specs=[pl.BlockSpec((1, hwt, ct), lambda n, c, t: (n, t, c)),
                      pl.BlockSpec((1, 1, ct), lambda n, c, t: (n, 0, c)),
                      pl.BlockSpec((1, 1, ct), lambda n, c, t: (n, 0, c))],
            out_specs=pl.BlockSpec((1, hwt, ct), lambda n, c, t: (n, t, c)),
            compiler_params=pltpu.CompilerParams(
                dimension_semantics=("parallel", "parallel", "parallel"),
                vmem_limit_bytes=cfg["big_vmem"]),
        )(xr, mean, rstd)
    return y.reshape(N, H, W, C)


# ----------------------------------------------------------------------------
# Unet blocks / Generator (parameters + forward)
# ----------------------------------------------------------------------------
def _init_conv(key, cin, cout, k):
    kw, kb = jax.random.split(key)
    bound = 1.0 / math.sqrt(cin * k * k)        # PyTorch default conv init range
    w = jax.random.uniform(kw, (cout, cin, k, k), jnp.float32, -bound, bound)
    b = jax.random.uniform(kb, (cout,), jnp.float32, -bound, bound)
    return {"w": w, "b": b}


def init_unet_block(key, outer, inner, input_ch=None, sub=None,
                    outer_most=False, inner_most=False, dropout=False):
    if input_ch is None:
        input_ch = outer
    k1, k2 = jax.random.split(key)
    down_conv = _init_conv(k1, input_ch, inner, 4)          # k4 s2 p1
    up_in = inner if inner_most else inner * 2
    up_conv = _init_conv(k2, up_in, outer, 3)               # k3 s1 p1 (post 2x up)
    return {"down": down_conv, "up": up_conv, "sub": sub,
            "outer_most": outer_most, "inner_most": inner_most,
            "dropout": dropout}


def unet_block_forward(p, x):
    """x: NHWC."""
    if p["outer_most"]:
        # first conv kept in f32 for fidelity; output bf16 (interior activation)
        h = conv2d(x, p["down"]["w"], p["down"]["b"], stride=2, padding=1,
                   compute_dtype=jnp.float32, out_dtype=jnp.bfloat16)
        h = unet_block_forward(p["sub"], h)
        h = upsample_bilinear_2x(h, pre_relu=True)            # fused ReLU
        # final conv kept in f32, Tanh fused into the conv epilogue
        h = conv2d(h, p["up"]["w"], p["up"]["b"], stride=1, padding=1,
                   post_act="tanh", compute_dtype=jnp.float32,
                   out_dtype=jnp.float32)
        return h
    elif p["inner_most"]:
        h = conv2d(x, p["down"]["w"], p["down"]["b"], stride=2, padding=1,
                   pre_act="leaky_relu",                      # fused LeakyReLU
                   compute_dtype=jnp.bfloat16, out_dtype=jnp.bfloat16)
        h = upsample_bilinear_2x(h, pre_relu=True)            # fused ReLU
        h = conv2d(h, p["up"]["w"], p["up"]["b"], stride=1, padding=1,
                   compute_dtype=jnp.bfloat16, out_dtype=jnp.bfloat16)
        h = instance_norm(h)
        # TODO(synk): write h into a preallocated concat buffer via
        # input_output_aliases to drop this HBM copy.
        return jnp.concatenate([x, h], axis=-1)               # skip cat (channels)
    else:
        h = conv2d(x, p["down"]["w"], p["down"]["b"], stride=2, padding=1,
                   pre_act="leaky_relu",                      # fused LeakyReLU
                   compute_dtype=jnp.bfloat16, out_dtype=jnp.bfloat16)
        h = instance_norm(h)
        h = unet_block_forward(p["sub"], h)
        h = upsample_bilinear_2x(h, pre_relu=True)            # fused ReLU
        h = conv2d(h, p["up"]["w"], p["up"]["b"], stride=1, padding=1,
                   compute_dtype=jnp.bfloat16, out_dtype=jnp.bfloat16)
        h = instance_norm(h)
        # TODO(synk): nn.Dropout(0.5) train-mode masking not implemented; eval-mode identity.
        return jnp.concatenate([x, h], axis=-1)


def init_generator(key, num_downs, in_channel, out_channel):
    keys = jax.random.split(key, num_downs + 1)
    blk = init_unet_block(keys[0], 512, 512, inner_most=True)
    ki = 1
    for _ in range(num_downs - 5):
        blk = init_unet_block(keys[ki], 512, 512, sub=blk, dropout=True)
        ki += 1
    blk = init_unet_block(keys[ki], 256, 512, sub=blk); ki += 1
    blk = init_unet_block(keys[ki], 128, 256, sub=blk); ki += 1
    blk = init_unet_block(keys[ki], 64, 128, sub=blk); ki += 1
    blk = init_unet_block(keys[ki], out_channel, 64, input_ch=in_channel,
                          sub=blk, outer_most=True)
    return blk


def generator_forward(params, x_nchw):
    """x_nchw: (N, C, H, W) like the PyTorch module.  Returns NCHW (f32)."""
    x = jnp.transpose(x_nchw, (0, 2, 3, 1))     # NCHW -> NHWC
    y = unet_block_forward(params, x)
    return jnp.transpose(y, (0, 3, 1, 2))       # NHWC -> NCHW


# ----------------------------------------------------------------------------
if __name__ == "__main__":
    # args: num_downs=5 (smallest valid), in_channel=3, out_channel=3
    num_downs, in_channel, out_channel = 5, 3, 3
    key = jax.random.PRNGKey(0)
    pkey, xkey = jax.random.split(key)

    params = init_generator(pkey, num_downs, in_channel, out_channel)

    # spatial must be divisible by 2**num_downs = 32
    x = jax.random.normal(xkey, (2, in_channel, 32, 32), jnp.float32)

    y = generator_forward(params, x)
    y = jax.block_until_ready(y)
    assert y.shape == (2, out_channel, 32, 32), y.shape
    assert bool(jnp.all(jnp.isfinite(y)))
    print("KERNEL_OK")
</pallas_src>

<mosaic_0001>
module attributes {stable_mosaic.version = 11 : i64} {
  func.func @kernel(%arg0: i32, %arg1: i32, %arg2: i32, %arg3: memref<512x48xf32, #tpu.memory_space<vmem>>, %arg4: memref<48x128xf32, #tpu.memory_space<vmem>>, %arg5: memref<1x128xf32, #tpu.memory_space<vmem>>, %arg6: memref<512x128xbf16, #tpu.memory_space<vmem>>) attributes {dimension_semantics = [#tpu.dimension_semantics<parallel>, #tpu.dimension_semantics<parallel>, #tpu.dimension_semantics<arbitrary>], iteration_bounds = array<i64: 1, 1, 1>, scalar_prefetch = 0 : i64, scratch_operands = 0 : i64, tpu.core_type = #tpu.core_type<tc>, window_params = [{transform_indices = @transform_0, window_bounds = array<i64: 512, 48>}, {transform_indices = @transform_1, window_bounds = array<i64: 48, 128>}, {transform_indices = @transform_2, window_bounds = array<i64: 1, 128>}, {transform_indices = @transform_3, window_bounds = array<i64: 512, 128>}]} {
    %c0 = arith.constant 0 : index
    %c0_0 = arith.constant 0 : index
    %0 = vector.load %arg3[%c0, %c0_0] : memref<512x48xf32, #tpu.memory_space<vmem>>, vector<512x48xf32>
    %c0_1 = arith.constant 0 : index
    %c0_2 = arith.constant 0 : index
    %1 = vector.load %arg4[%c0_1, %c0_2] : memref<48x128xf32, #tpu.memory_space<vmem>>, vector<48x128xf32>
    %cst = arith.constant dense<0.000000e+00> : vector<512x128xf32>
    %2 = tpu.matmul %0, %1, %cst {dimension_numbers = #tpu.dot_dimension_numbers<[1], [0], [0], [1], [0, 0, 1, 1], [], []>} : vector<512x48xf32>, vector<48x128xf32>, vector<512x128xf32> -> vector<512x128xf32>
    %c0_3 = arith.constant 0 : index
    %c0_4 = arith.constant 0 : index
    %3 = vector.load %arg5[%c0_3, %c0_4] : memref<1x128xf32, #tpu.memory_space<vmem>>, vector<1x128xf32>
    %4 = vector.broadcast %3 : vector<1x128xf32> to vector<512x128xf32>
    %5 = arith.addf %2, %4 : vector<512x128xf32>
    %6 = arith.truncf %5 : vector<512x128xf32> to vector<512x128xbf16>
    %c0_5 = arith.constant 0 : index
    %c0_6 = arith.constant 0 : index
    %7 = vector.load %arg6[%c0_5, %c0_6] : memref<512x128xbf16, #tpu.memory_space<vmem>>, vector<512x128xbf16>
    tpu.vector_store %arg6[%c0_5, %c0_6], %6 {strides = array<i32>} : memref<512x128xbf16, #tpu.memory_space<vmem>>, vector<512x128xbf16>,
    return
  }
  func.func @transform_0(%arg0: i32, %arg1: i32, %arg2: i32) -> (i32, i32) {
    %c0_i32 = arith.constant 0 : i32
    return %arg0, %arg2 : i32, i32
  }
  func.func @transform_1(%arg0: i32, %arg1: i32, %arg2: i32) -> (i32, i32) {
    %c0_i32 = arith.constant 0 : i32
    return %arg2, %arg1 : i32, i32
  }
  func.func @transform_2(%arg0: i32, %arg1: i32, %arg2: i32) -> (i32, i32) {
    %c0_i32 = arith.constant 0 : i32
    %c0_i32_0 = arith.constant 0 : i32
    return %c0_i32, %arg1 : i32, i32
  }
  func.func @transform_3(%arg0: i32, %arg1: i32, %arg2: i32) -> (i32, i32) {
    %c0_i32 = arith.constant 0 : i32
    return %arg0, %arg1 : i32, i32
  }
}

</mosaic_0001>

<llo_original>
// kernel: tpu_custom_call.1
$region0: #{tpu_custom_call.1}
  #allocation0 [shape = 'u32[]', space=smem, size = 0x4, offset = 0x4, fixed_abs, tag = 'smem constant byte address 0x4 - core index']
  #allocation1 [shape = 'u32[144,128]{1,0:T(1,128)}', space=vmem, size = 0x12000, scoped, tag = 'internal scratch']
  %s0 = inlined_call_operand.vmem [shape: f32[512,48], index: 0, kind: input, shape index: {}]
  %s1 = inlined_call_operand.vmem [shape: f32[48,128], index: 1, kind: input, shape index: {}]
  %s2 = inlined_call_operand.vmem [shape: f32[1,128], index: 2, kind: input, shape index: {}]
  %s3 = inlined_call_operand.hbm [shape: bf16[512,128], index: 3, kind: output, shape index: {}]
  %s4 = sld [smem:[#allocation0]]
  $region22: #{tpu_custom_call.1} parent=0
    _
  %s6 = ssub.s32 1, %s4
  %s7 = scalar_select 0, %s6, %s4
  $region1: #{tpu_custom_call.1} parent=0
    #allocation2 [shape = 'u8[131072]{0}', space=vmem, size = 0x20000, scoped, tag = 'output window, operand 0, single buffered']
    #allocation3 [shape = 's32[1]{0}', space=sflag, size = 0x4, scoped, tag = 'scoped memory for tpu_custom_call.1']
    %8 = vsyncpa [#allocation3], 0
    // Predicated region
    $region2: #{tpu_custom_call.1} parent=1 // pred_check
      _
    $region3: #{tpu_custom_call.1} parent=1 // pred_check_branch
      %10 = sbr.rel (0) target = $region5
    $region4: #{tpu_custom_call.1} parent=1 // pred_region
      _
    $region5: #{tpu_custom_call.1} parent=1 // pred_fallthru
      _
    // Predicated region
    $region6: #{tpu_custom_call.1} parent=1 // pred_check
      _
    $region7: #{tpu_custom_call.1} parent=1 // pred_check_branch
      %12 = sbr.rel (0) target = $region9
    $region8: #{tpu_custom_call.1} parent=1 // pred_region
      _
    $region9: #{tpu_custom_call.1} parent=1 // pred_fallthru
      _
    // Predicated region
    $region10: #{tpu_custom_call.1} parent=1 // pred_check
      _
    $region11: #{tpu_custom_call.1} parent=1 // pred_check_branch
      %14 = sbr.rel (0) target = $region13
    $region12: #{tpu_custom_call.1} parent=1 // pred_region
      _
    $region13: #{tpu_custom_call.1} parent=1 // pred_fallthru
      _
    %v15 = vld [vmem:[%s0] sm:$0xff]
    %v16 = vld [vmem:[%s0 + $0x8] sm:$0xff]
    %v17 = vld [vmem:[%s0 + $0x10] sm:$0xff]
    %v18 = vld [vmem:[%s0 + $0x18] sm:$0xff]
    %v19 = vld [vmem:[%s0 + $0x20] sm:$0xff]
    %v20 = vld [vmem:[%s0 + $0x28] sm:$0xff]
    %v21 = vld [vmem:[%s0 + $0x30] sm:$0xff]
    %v22 = vld [vmem:[%s0 + $0x38] sm:$0xff]
    %v23 = vld [vmem:[%s0 + $0x40] sm:$0xff]
    %v24 = vld [vmem:[%s0 + $0x48] sm:$0xff]
    %v25 = vld [vmem:[%s0 + $0x50] sm:$0xff]
    %v26 = vld [vmem:[%s0 + $0x58] sm:$0xff]
    %v27 = vld [vmem:[%s0 + $0x60] sm:$0xff]
    %v28 = vld [vmem:[%s0 + $0x68] sm:$0xff]
    %v29 = vld [vmem:[%s0 + $0x70] sm:$0xff]
    %v30 = vld [vmem:[%s0 + $0x78] sm:$0xff]
    %v31 = vld [vmem:[%s0 + $0x80] sm:$0xff]
    %v32 = vld [vmem:[%s0 + $0x88] sm:$0xff]
    %v33 = vld [vmem:[%s0 + $0x90] sm:$0xff]
    %v34 = vld [vmem:[%s0 + $0x98] sm:$0xff]
    %v35 = vld [vmem:[%s0 + $0xa0] sm:$0xff]
    %v36 = vld [vmem:[%s0 + $0xa8] sm:$0xff]
    %v37 = vld [vmem:[%s0 + $0xb0] sm:$0xff]
    %v38 = vld [vmem:[%s0 + $0xb8] sm:$0xff]
    %v39 = vld [vmem:[%s0 + $0xc0] sm:$0xff]
    %v40 = vld [vmem:[%s0 + $0xc8] sm:$0xff]
    %v41 = vld [vmem:[%s0 + $0xd0] sm:$0xff]
    %v42 = vld [vmem:[%s0 + $0xd8] sm:$0xff]
    %v43 = vld [vmem:[%s0 + $0xe0] sm:$0xff]
    %v44 = vld [vmem:[%s0 + $0xe8] sm:$0xff]
    %v45 = vld [vmem:[%s0 + $0xf0] sm:$0xff]
    %v46 = vld [vmem:[%s0 + $0xf8] sm:$0xff]
    %v47 = vld [vmem:[%s0 + $0x100] sm:$0xff]
    %v48 = vld [vmem:[%s0 + $0x108] sm:$0xff]
    %v49 = vld [vmem:[%s0 + $0x110] sm:$0xff]
    %v50 = vld [vmem:[%s0 + $0x118] sm:$0xff]
    %v51 = vld [vmem:[%s0 + $0x120] sm:$0xff]
    %v52 = vld [vmem:[%s0 + $0x128] sm:$0xff]
    %v53 = vld [vmem:[%s0 + $0x130] sm:$0xff]
    %v54 = vld [vmem:[%s0 + $0x138] sm:$0xff]
    %v55 = vld [vmem:[%s0 + $0x140] sm:$0xff]
    %v56 = vld [vmem:[%s0 + $0x148] sm:$0xff]
    %v57 = vld [vmem:[%s0 + $0x150] sm:$0xff]
    %v58 = vld [vmem:[%s0 + $0x158] sm:$0xff]
    %v59 = vld [vmem:[%s0 + $0x160] sm:$0xff]
    %v60 = vld [vmem:[%s0 + $0x168] sm:$0xff]
    %v61 = vld [vmem:[%s0 + $0x170] sm:$0xff]
    %v62 = vld [vmem:[%s0 + $0x178] sm:$0xff]
    %v63 = vld [vmem:[%s0 + $0x180] sm:$0xff]
    %v64 = vld [vmem:[%s0 + $0x188] sm:$0xff]
    %v65 = vld [vmem:[%s0 + $0x190] sm:$0xff]
    %v66 = vld [vmem:[%s0 + $0x198] sm:$0xff]
    %v67 = vld [vmem:[%s0 + $0x1a0] sm:$0xff]
    %v68 = vld [vmem:[%s0 + $0x1a8] sm:$0xff]
    %v69 = vld [vmem:[%s0 + $0x1b0] sm:$0xff]
    %v70 = vld [vmem:[%s0 + $0x1b8] sm:$0xff]
    %v71 = vld [vmem:[%s0 + $0x1c0] sm:$0xff]
    %v72 = vld [vmem:[%s0 + $0x1c8] sm:$0xff]
    %v73 = vld [vmem:[%s0 + $0x1d0] sm:$0xff]
    %v74 = vld [vmem:[%s0 + $0x1d8] sm:$0xff]
    %v75 = vld [vmem:[%s0 + $0x1e0] sm:$0xff]
    %v76 = vld [vmem:[%s0 + $0x1e8] sm:$0xff]
    %v77 = vld [vmem:[%s0 + $0x1f0] sm:$0xff]
    %v78 = vld [vmem:[%s0 + $0x1f8] sm:$0xff]
    %v79 = vld [vmem:[%s1] sm:$0xff]
    %v80 = vld [vmem:[%s1 + $0x8] sm:$0xff]
    %v81 = vld [vmem:[%s1 + $0x10] sm:$0xff]
    %v82 = vld [vmem:[%s1 + $0x18] sm:$0xff]
    %v83 = vld [vmem:[%s1 + $0x20] sm:$0xff]
    %v84 = vld [vmem:[%s1 + $0x28] sm:$0xff]
    %v85 = vld [vmem:[%s2] sm:$0x1]
    %v87 = vlaneseq
    %v88 = vshrl.u32 %v87, 7
    %v89 = vsub.s32 0, %v88
    %v90 = vrot.slane %v85, %v89
    %vm92 = vcmask 392192
    %v94 = vsel %vm92, %v15, 0
    %v97 = vsel %vm92, %v16, 0
    %v100 = vsel %vm92, %v17, 0
    %v103 = vsel %vm92, %v18, 0
    %v106 = vsel %vm92, %v19, 0
    %v109 = vsel %vm92, %v20, 0
    %v112 = vsel %vm92, %v21, 0
    %v115 = vsel %vm92, %v22, 0
    %v118 = vsel %vm92, %v23, 0
    %v121 = vsel %vm92, %v24, 0
    %v124 = vsel %vm92, %v25, 0
    %v127 = vsel %vm92, %v26, 0
    %v130 = vsel %vm92, %v27, 0
    %v133 = vsel %vm92, %v28, 0
    %v136 = vsel %vm92, %v29, 0
    %v139 = vsel %vm92, %v30, 0
    %v142 = vsel %vm92, %v31, 0
    %v145 = vsel %vm92, %v32, 0
    %v148 = vsel %vm92, %v33, 0
    %v151 = vsel %vm92, %v34, 0
    %v154 = vsel %vm92, %v35, 0
    %v157 = vsel %vm92, %v36, 0
    %v160 = vsel %vm92, %v37, 0
    %v163 = vsel %vm92, %v38, 0
    %v166 = vsel %vm92, %v39, 0
    %v169 = vsel %vm92, %v40, 0
    %v172 = vsel %vm92, %v41, 0
    %v175 = vsel %vm92, %v42, 0
    %v178 = vsel %vm92, %v43, 0
    %v181 = vsel %vm92, %v44, 0
    %v184 = vsel %vm92, %v45, 0
    %v187 = vsel %vm92, %v46, 0
    %v190 = vsel %vm92, %v47, 0
    %v193 = vsel %vm92, %v48, 0
    %v196 = vsel %vm92, %v49, 0
    %v199 = vsel %vm92, %v50, 0
    %v202 = vsel %vm92, %v51, 0
    %v205 = vsel %vm92, %v52, 0
    %v208 = vsel %vm92, %v53, 0
    %v211 = vsel %vm92, %v54, 0
    %v214 = vsel %vm92, %v55, 0
    %v217 = vsel %vm92, %v56, 0
    %v220 = vsel %vm92, %v57, 0
    %v223 = vsel %vm92, %v58, 0
    %v226 = vsel %vm92, %v59, 0
    %v229 = vsel %vm92, %v60, 0
    %v232 = vsel %vm92, %v61, 0
    %v235 = vsel %vm92, %v62, 0
    %v238 = vsel %vm92, %v63, 0
    %v241 = vsel %vm92, %v64, 0
    %v244 = vsel %vm92, %v65, 0
    %v247 = vsel %vm92, %v66, 0
    %v250 = vsel %vm92, %v67, 0
    %v253 = vsel %vm92, %v68, 0
    %v256 = vsel %vm92, %v69, 0
    %v259 = vsel %vm92, %v70, 0
    %v262 = vsel %vm92, %v71, 0
    %v265 = vsel %vm92, %v72, 0
    %v268 = vsel %vm92, %v73, 0
    %v271 = vsel %vm92, %v74, 0
    %v274 = vsel %vm92, %v75, 0
    %v277 = vsel %vm92, %v76, 0
    %v280 = vsel %vm92, %v77, 0
    %v283 = vsel %vm92, %v78, 0
    %285 = vmatprep.subr.mxu0 0.0
    %286 = vmatpush1.msra.mxu0 0.0
    %287 = vmatprep.subr.mxu0 0.0
    %288 = vmatpush1.msra.mxu0 0.0
    %289 = vmatprep.subr.mxu0 0.0
    %290 = vmatpush1.msra.mxu0 0.0
    %291 = vmatprep.subr.mxu0 0.0
    %292 = vmatpush1.msra.mxu0 0.0
    %293 = vmatprep.subr.mxu0 0.0
    %294 = vmatpush1.msra.mxu0 0.0
    %295 = vmatprep.subr.mxu0 0.0
    %296 = vmatpush1.msra.mxu0 0.0
    %297 = vmatprep.subr.mxu0 0.0
    %298 = vmatpush1.msra.mxu0 0.0
    %299 = vmatprep.subr.mxu0 0.0
    %300 = vmatpush1.msra.mxu0 0.0
    %301 = vmatprep.subr.mxu0 0.0
    %302 = vmatpush1.msra.mxu0 0.0
    %303 = vmatprep.subr.mxu0 0.0
    %304 = vmatpush1.msra.mxu0 0.0
    %305 = vmatprep.subr.mxu0 0.0
    %306 = vmatpush1.msra.mxu0 %v84
    %307 = vmatprep.subr.mxu0 0.0
    %308 = vmatpush1.msra.mxu0 %v83
    %309 = vmatprep.subr.mxu0 0.0
    %310 = vmatpush1.msra.mxu0 %v82
    %311 = vmatprep.subr.mxu0 0.0
    %312 = vmatpush1.msra.mxu0 %v81
    %313 = vmatprep.subr.mxu0 0.0
    %314 = vmatpush1.msra.mxu0 %v80
    %315 = vmatprep.subr.mxu0 0.0
    %316 = vmatpush1.msra.mxu0 %v79
    %317 = vmatprep.subr.mxu0 0.0
    %318 = vmatpush2.msra.mxu0 0.0
    %319 = vmatprep.subr.mxu0 0.0
    %320 = vmatpush2.msra.mxu0 0.0
    %321 = vmatprep.subr.mxu0 0.0
    %322 = vmatpush2.msra.mxu0 0.0
    %323 = vmatprep.subr.mxu0 0.0
    %324 = vmatpush2.msra.mxu0 0.0
    %325 = vmatprep.subr.mxu0 0.0
    %326 = vmatpush2.msra.mxu0 0.0
    %327 = vmatprep.subr.mxu0 0.0
    %328 = vmatpush2.msra.mxu0 0.0
    %329 = vmatprep.subr.mxu0 0.0
    %330 = vmatpush2.msra.mxu0 0.0
    %331 = vmatprep.subr.mxu0 0.0
    %332 = vmatpush2.msra.mxu0 0.0
    %333 = vmatprep.subr.mxu0 0.0
    %334 = vmatpush2.msra.mxu0 0.0
    %335 = vmatprep.subr.mxu0 0.0
    %336 = vmatpush2.msra.mxu0 0.0
    %337 = vmatprep.subr.mxu0 0.0
    %338 = vmatpush2.msra.mxu0 0.0
    %339 = vmatprep.subr.mxu0 0.0
    %340 = vmatpush2.msra.mxu0 0.0
    %341 = vmatprep.subr.mxu0 0.0
    %342 = vmatpush2.msra.mxu0 0.0
    %343 = vmatprep.subr.mxu0 0.0
    %344 = vmatpush2.msra.mxu0 0.0
    %345 = vmatprep.subr.mxu0 0.0
    %346 = vmatpush2.msra.mxu0 0.0
    %347 = vmatprep.subr.mxu0 0.0
    %348 = vmatpush2.msra.mxu0 0.0
    %349 = vmatprep.mubr.f32.mxu0 0.0
    %350 = vmatmul.mubr.f32.gmra.mxu0 %v94
    %v351 = vpop.f32.mrf.mxu0
    %v352 = vadd.f32 %v90, %v351
    %v353 = vpop.f32.mrf.mxu0
    %354 = vmatprep.mubr.f32.mxu0 0.0
    %355 = vmatmul.mubr.f32.gmra.mxu0 %v97
    %v356 = vpop.f32.mrf.mxu0
    %v357 = vadd.f32 %v90, %v356
    %v358 = vpop.f32.mrf.mxu0
    %359 = vmatprep.mubr.f32.mxu0 0.0
    %360 = vmatmul.mubr.f32.gmra.mxu0 %v100
    %v361 = vpop.f32.mrf.mxu0
    %v362 = vadd.f32 %v90, %v361
    %v363 = vpop.f32.mrf.mxu0
    %364 = vmatprep.mubr.f32.mxu0 0.0
    %365 = vmatmul.mubr.f32.gmra.mxu0 %v103
    %v366 = vpop.f32.mrf.mxu0
    %v367 = vadd.f32 %v90, %v366
    %v368 = vpop.f32.mrf.mxu0
    %369 = vmatprep.mubr.f32.mxu0 0.0
    %370 = vmatmul.mubr.f32.gmra.mxu0 %v106
    %v371 = vpop.f32.mrf.mxu0
    %v372 = vadd.f32 %v90, %v371
    %v373 = vpop.f32.mrf.mxu0
    %374 = vmatprep.mubr.f32.mxu0 0.0
    %375 = vmatmul.mubr.f32.gmra.mxu0 %v109
    %v376 = vpop.f32.mrf.mxu0
    %v377 = vadd.f32 %v90, %v376
    %v378 = vpop.f32.mrf.mxu0
    %379 = vmatprep.mubr.f32.mxu0 0.0
    %380 = vmatmul.mubr.f32.gmra.mxu0 %v112
    %v381 = vpop.f32.mrf.mxu0
    %v382 = vadd.f32 %v90, %v381
    %v383 = vpop.f32.mrf.mxu0
    %384 = vmatprep.mubr.f32.mxu0 0.0
    %385 = vmatmul.mubr.f32.gmra.mxu0 %v115
    %v386 = vpop.f32.mrf.mxu0
    %v387 = vadd.f32 %v90, %v386
    %v388 = vpop.f32.mrf.mxu0
    %389 = vmatprep.mubr.f32.mxu0 0.0
    %390 = vmatmul.mubr.f32.gmra.mxu0 %v118
    %v391 = vpop.f32.mrf.mxu0
    %v392 = vadd.f32 %v90, %v391
    %v393 = vpop.f32.mrf.mxu0
    %394 = vmatprep.mubr.f32.mxu0 0.0
    %395 = vmatmul.mubr.f32.gmra.mxu0 %v121
    %v396 = vpop.f32.mrf.mxu0
    %v397 = vadd.f32 %v90, %v396
    %v398 = vpop.f32.mrf.mxu0
    %399 = vmatprep.mubr.f32.mxu0 0.0
    %400 = vmatmul.mubr.f32.gmra.mxu0 %v124
    %v401 = vpop.f32.mrf.mxu0
    %v402 = vadd.f32 %v90, %v401
    %v403 = vpop.f32.mrf.mxu0
    %404 = vmatprep.mubr.f32.mxu0 0.0
    %405 = vmatmul.mubr.f32.gmra.mxu0 %v127
    %v406 = vpop.f32.mrf.mxu0
    %v407 = vadd.f32 %v90, %v406
    %v408 = vpop.f32.mrf.mxu0
    %409 = vmatprep.mubr.f32.mxu0 0.0
    %410 = vmatmul.mubr.f32.gmra.mxu0 %v130
    %v411 = vpop.f32.mrf.mxu0
    %v412 = vadd.f32 %v90, %v411
    %v413 = vpop.f32.mrf.mxu0
    %414 = vmatprep.mubr.f32.mxu0 0.0
    %415 = vmatmul.mubr.f32.gmra.mxu0 %v133
    %v416 = vpop.f32.mrf.mxu0
    %v417 = vadd.f32 %v90, %v416
    %v418 = vpop.f32.mrf.mxu0
    %419 = vmatprep.mubr.f32.mxu0 0.0
    %420 = vmatmul.mubr.f32.gmra.mxu0 %v136
    %v421 = vpop.f32.mrf.mxu0
    %v422 = vadd.f32 %v90, %v421
    %v423 = vpop.f32.mrf.mxu0
    %424 = vmatprep.mubr.f32.mxu0 0.0
    %425 = vmatmul.mubr.f32.gmra.mxu0 %v139
    %v426 = vpop.f32.mrf.mxu0
    %v427 = vadd.f32 %v90, %v426
    %v428 = vpop.f32.mrf.mxu0
    %429 = vmatprep.mubr.f32.mxu0 0.0
    %430 = vmatmul.mubr.f32.gmra.mxu0 %v142
    %v431 = vpop.f32.mrf.mxu0
    %v432 = vadd.f32 %v90, %v431
    %v433 = vpop.f32.mrf.mxu0
    %434 = vmatprep.mubr.f32.mxu0 0.0
    %435 = vmatmul.mubr.f32.gmra.mxu0 %v145
    %v436 = vpop.f32.mrf.mxu0
    %v437 = vadd.f32 %v90, %v436
    %v438 = vpop.f32.mrf.mxu0
    %439 = vmatprep.mubr.f32.mxu0 0.0
    %440 = vmatmul.mubr.f32.gmra.mxu0 %v148
    %v441 = vpop.f32.mrf.mxu0
    %v442 = vadd.f32 %v90, %v441
    %v443 = vpop.f32.mrf.mxu0
    %444 = vmatprep.mubr.f32.mxu0 0.0
    %445 = vmatmul.mubr.f32.gmra.mxu0 %v151
    %v446 = vpop.f32.mrf.mxu0
    %v447 = vadd.f32 %v90, %v446
    %v448 = vpop.f32.mrf.mxu0
    %449 = vmatprep.mubr.f32.mxu0 0.0
    %450 = vmatmul.mubr.f32.gmra.mxu0 %v154
    %v451 = vpop.f32.mrf.mxu0
    %v452 = vadd.f32 %v90, %v451
    %v453 = vpop.f32.mrf.mxu0
    %454 = vmatprep.mubr.f32.mxu0 0.0
    %455 = vmatmul.mubr.f32.gmra.mxu0 %v157
    %v456 = vpop.f32.mrf.mxu0
    %v457 = vadd.f32 %v90, %v456
    %v458 = vpop.f32.mrf.mxu0
    %459 = vmatprep.mubr.f32.mxu0 0.0
    %460 = vmatmul.mubr.f32.gmra.mxu0 %v160
    %v461 = vpop.f32.mrf.mxu0
    %v462 = vadd.f32 %v90, %v461
    %v463 = vpop.f32.mrf.mxu0
    %464 = vmatprep.mubr.f32.mxu0 0.0
    %465 = vmatmul.mubr.f32.gmra.mxu0 %v163
    %v466 = vpop.f32.mrf.mxu0
    %v467 = vadd.f32 %v90, %v466
    %v468 = vpop.f32.mrf.mxu0
    %469 = vmatprep.mubr.f32.mxu0 0.0
    %470 = vmatmul.mubr.f32.gmra.mxu0 %v166
    %v471 = vpop.f32.mrf.mxu0
    %v472 = vadd.f32 %v90, %v471
    %v473 = vpop.f32.mrf.mxu0
    %474 = vmatprep.mubr.f32.mxu0 0.0
    %475 = vmatmul.mubr.f32.gmra.mxu0 %v169
    %v476 = vpop.f32.mrf.mxu0
    %v477 = vadd.f32 %v90, %v476
    %v478 = vpop.f32.mrf.mxu0
    %479 = vmatprep.mubr.f32.mxu0 0.0
    %480 = vmatmul.mubr.f32.gmra.mxu0 %v172
    %v481 = vpop.f32.mrf.mxu0
    %v482 = vadd.f32 %v90, %v481
    %v483 = vpop.f32.mrf.mxu0
    %484 = vmatprep.mubr.f32.mxu0 0.0
    %485 = vmatmul.mubr.f32.gmra.mxu0 %v175
    %v486 = vpop.f32.mrf.mxu0
    %v487 = vadd.f32 %v90, %v486
    %v488 = vpop.f32.mrf.mxu0
    %489 = vmatprep.mubr.f32.mxu0 0.0
    %490 = vmatmul.mubr.f32.gmra.mxu0 %v178
    %v491 = vpop.f32.mrf.mxu0
    %v492 = vadd.f32 %v90, %v491
    %v493 = vpop.f32.mrf.mxu0
    %494 = vmatprep.mubr.f32.mxu0 0.0
    %495 = vmatmul.mubr.f32.gmra.mxu0 %v181
    %v496 = vpop.f32.mrf.mxu0
    %v497 = vadd.f32 %v90, %v496
    %v498 = vpop.f32.mrf.mxu0
    %499 = vmatprep.mubr.f32.mxu0 0.0
    %500 = vmatmul.mubr.f32.gmra.mxu0 %v184
    %v501 = vpop.f32.mrf.mxu0
    %v502 = vadd.f32 %v90, %v501
    %v503 = vpop.f32.mrf.mxu0
    %504 = vmatprep.mubr.f32.mxu0 0.0
    %505 = vmatmul.mubr.f32.gmra.mxu0 %v187
    %v506 = vpop.f32.mrf.mxu0
    %v507 = vadd.f32 %v90, %v506
    %v508 = vpop.f32.mrf.mxu0
    %509 = vmatprep.mubr.f32.mxu0 0.0
    %510 = vmatmul.mubr.f32.gmra.mxu0 %v190
    %v511 = vpop.f32.mrf.mxu0
    %v512 = vadd.f32 %v90, %v511
    %v513 = vpop.f32.mrf.mxu0
    %514 = vmatprep.mubr.f32.mxu0 0.0
    %515 = vmatmul.mubr.f32.gmra.mxu0 %v193
    %v516 = vpop.f32.mrf.mxu0
    %v517 = vadd.f32 %v90, %v516
    %v518 = vpop.f32.mrf.mxu0
    %519 = vmatprep.mubr.f32.mxu0 0.0
    %520 = vmatmul.mubr.f32.gmra.mxu0 %v196
    %v521 = vpop.f32.mrf.mxu0
    %v522 = vadd.f32 %v90, %v521
    %v523 = vpop.f32.mrf.mxu0
    %524 = vmatprep.mubr.f32.mxu0 0.0
    %525 = vmatmul.mubr.f32.gmra.mxu0 %v199
    %v526 = vpop.f32.mrf.mxu0
    %v527 = vadd.f32 %v90, %v526
    %v528 = vpop.f32.mrf.mxu0
    %529 = vmatprep.mubr.f32.mxu0 0.0
    %530 = vmatmul.mubr.f32.gmra.mxu0 %v202
    %v531 = vpop.f32.mrf.mxu0
    %v532 = vadd.f32 %v90, %v531
    %v533 = vpop.f32.mrf.mxu0
    %534 = vmatprep.mubr.f32.mxu0 0.0
    %535 = vmatmul.mubr.f32.gmra.mxu0 %v205
    %v536 = vpop.f32.mrf.mxu0
    %v537 = vadd.f32 %v90, %v536
    %v538 = vpop.f32.mrf.mxu0
    %539 = vmatprep.mubr.f32.mxu0 0.0
    %540 = vmatmul.mubr.f32.gmra.mxu0 %v208
    %v541 = vpop.f32.mrf.mxu0
    %v542 = vadd.f32 %v90, %v541
    %v543 = vpop.f32.mrf.mxu0
    %544 = vmatprep.mubr.f32.mxu0 0.0
    %545 = vmatmul.mubr.f32.gmra.mxu0 %v211
    %v546 = vpop.f32.mrf.mxu0
    %v547 = vadd.f32 %v90, %v546
    %v548 = vpop.f32.mrf.mxu0
    %549 = vmatprep.mubr.f32.mxu0 0.0
    %550 = vmatmul.mubr.f32.gmra.mxu0 %v214
    %v551 = vpop.f32.mrf.mxu0
    %v552 = vadd.f32 %v90, %v551
    %v553 = vpop.f32.mrf.mxu0
    %554 = vmatprep.mubr.f32.mxu0 0.0
    %555 = vmatmul.mubr.f32.gmra.mxu0 %v217
    %v556 = vpop.f32.mrf.mxu0
    %v557 = vadd.f32 %v90, %v556
    %v558 = vpop.f32.mrf.mxu0
    %559 = vmatprep.mubr.f32.mxu0 0.0
    %560 = vmatmul.mubr.f32.gmra.mxu0 %v220
    %v561 = vpop.f32.mrf.mxu0
    %v562 = vadd.f32 %v90, %v561
    %v563 = vpop.f32.mrf.mxu0
    %564 = vmatprep.mubr.f32.mxu0 0.0
    %565 = vmatmul.mubr.f32.gmra.mxu0 %v223
    %v566 = vpop.f32.mrf.mxu0
    %v567 = vadd.f32 %v90, %v566
    %v568 = vpop.f32.mrf.mxu0
    %569 = vmatprep.mubr.f32.mxu0 0.0
    %570 = vmatmul.mubr.f32.gmra.mxu0 %v226
    %v571 = vpop.f32.mrf.mxu0
    %v572 = vadd.f32 %v90, %v571
    %v573 = vpop.f32.mrf.mxu0
    %574 = vmatprep.mubr.f32.mxu0 0.0
    %575 = vmatmul.mubr.f32.gmra.mxu0 %v229
    %v576 = vpop.f32.mrf.mxu0
    %v577 = vadd.f32 %v90, %v576
    %v578 = vpop.f32.mrf.mxu0
    %579 = vmatprep.mubr.f32.mxu0 0.0
    %580 = vmatmul.mubr.f32.gmra.mxu0 %v232
    %v581 = vpop.f32.mrf.mxu0
    %v582 = vadd.f32 %v90, %v581
    %v583 = vpop.f32.mrf.mxu0
    %584 = vmatprep.mubr.f32.mxu0 0.0
    %585 = vmatmul.mubr.f32.gmra.mxu0 %v235
    %v586 = vpop.f32.mrf.mxu0
    %v587 = vadd.f32 %v90, %v586
    %v588 = vpop.f32.mrf.mxu0
    %589 = vmatprep.mubr.f32.mxu0 0.0
    %590 = vmatmul.mubr.f32.gmra.mxu0 %v238
    %v591 = vpop.f32.mrf.mxu0
    %v592 = vadd.f32 %v90, %v591
    %v593 = vpop.f32.mrf.mxu0
    %594 = vmatprep.mubr.f32.mxu0 0.0
    %595 = vmatmul.mubr.f32.gmra.mxu0 %v241
    %v596 = vpop.f32.mrf.mxu0
    %v597 = vadd.f32 %v90, %v596
    %v598 = vpop.f32.mrf.mxu0
    %599 = vmatprep.mubr.f32.mxu0 0.0
    %600 = vmatmul.mubr.f32.gmra.mxu0 %v244
    %v601 = vpop.f32.mrf.mxu0
    %v602 = vadd.f32 %v90, %v601
    %v603 = vpop.f32.mrf.mxu0
    %604 = vmatprep.mubr.f32.mxu0 0.0
    %605 = vmatmul.mubr.f32.gmra.mxu0 %v247
    %v606 = vpop.f32.mrf.mxu0
    %v607 = vadd.f32 %v90, %v606
    %v608 = vpop.f32.mrf.mxu0
    %609 = vmatprep.mubr.f32.mxu0 0.0
    %610 = vmatmul.mubr.f32.gmra.mxu0 %v250
    %v611 = vpop.f32.mrf.mxu0
    %v612 = vadd.f32 %v90, %v611
    %v613 = vpop.f32.mrf.mxu0
    %614 = vmatprep.mubr.f32.mxu0 0.0
    %615 = vmatmul.mubr.f32.gmra.mxu0 %v253
    %v616 = vpop.f32.mrf.mxu0
    %v617 = vadd.f32 %v90, %v616
    %v618 = vpop.f32.mrf.mxu0
    %619 = vmatprep.mubr.f32.mxu0 0.0
    %620 = vmatmul.mubr.f32.gmra.mxu0 %v256
    %v621 = vpop.f32.mrf.mxu0
    %v622 = vadd.f32 %v90, %v621
    %v623 = vpop.f32.mrf.mxu0
    %624 = vmatprep.mubr.f32.mxu0 0.0
    %625 = vmatmul.mubr.f32.gmra.mxu0 %v259
    %v626 = vpop.f32.mrf.mxu0
    %v627 = vadd.f32 %v90, %v626
    %v628 = vpop.f32.mrf.mxu0
    %629 = vmatprep.mubr.f32.mxu0 0.0
    %630 = vmatmul.mubr.f32.gmra.mxu0 %v262
    %v631 = vpop.f32.mrf.mxu0
    %v632 = vadd.f32 %v90, %v631
    %v633 = vpop.f32.mrf.mxu0
    %634 = vmatprep.mubr.f32.mxu0 0.0
    %635 = vmatmul.mubr.f32.gmra.mxu0 %v265
    %v636 = vpop.f32.mrf.mxu0
    %v637 = vadd.f32 %v90, %v636
    %v638 = vpop.f32.mrf.mxu0
    %639 = vmatprep.mubr.f32.mxu0 0.0
    %640 = vmatmul.mubr.f32.gmra.mxu0 %v268
    %v641 = vpop.f32.mrf.mxu0
    %v642 = vadd.f32 %v90, %v641
    %v643 = vpop.f32.mrf.mxu0
    %644 = vmatprep.mubr.f32.mxu0 0.0
    %645 = vmatmul.mubr.f32.gmra.mxu0 %v271
    %v646 = vpop.f32.mrf.mxu0
    %v647 = vadd.f32 %v90, %v646
    %v648 = vpop.f32.mrf.mxu0
    %649 = vmatprep.mubr.f32.mxu0 0.0
    %650 = vmatmul.mubr.f32.gmra.mxu0 %v274
    %v651 = vpop.f32.mrf.mxu0
    %v652 = vadd.f32 %v90, %v651
    %v653 = vpop.f32.mrf.mxu0
    %654 = vmatprep.mubr.f32.mxu0 0.0
    %655 = vmatmul.mubr.f32.gmra.mxu0 %v277
    %v656 = vpop.f32.mrf.mxu0
    %v657 = vadd.f32 %v90, %v656
    %v658 = vpop.f32.mrf.mxu0
    %659 = vmatprep.mubr.f32.mxu0 0.0
    %660 = vmatmul.mubr.f32.gmra.mxu0 %v280
    %v661 = vpop.f32.mrf.mxu0
    %v662 = vadd.f32 %v90, %v661
    %v663 = vpop.f32.mrf.mxu0
    %664 = vmatprep.mubr.f32.mxu0 0.0
    %665 = vmatmul.mubr.f32.gmra.mxu0 %v283
    %v666 = vpop.f32.mrf.mxu0
    %v667 = vadd.f32 %v90, %v666
    %v668 = vpop.f32.mrf.mxu0
    %669 = vdwg.mxu0
    %v670 = vpack.c.bf16 %v357, %v352
    %v671 = vpack.c.bf16 %v367, %v362
    %v672 = vpack.c.bf16 %v377, %v372
    %v673 = vpack.c.bf16 %v387, %v382
    %v674 = vpack.c.bf16 %v397, %v392
    %v675 = vpack.c.bf16 %v407, %v402
    %v676 = vpack.c.bf16 %v417, %v412
    %v677 = vpack.c.bf16 %v427, %v422
    %v678 = vpack.c.bf16 %v437, %v432
    %v679 = vpack.c.bf16 %v447, %v442
    %v680 = vpack.c.bf16 %v457, %v452
    %v681 = vpack.c.bf16 %v467, %v462
    %v682 = vpack.c.bf16 %v477, %v472
    %v683 = vpack.c.bf16 %v487, %v482
    %v684 = vpack.c.bf16 %v497, %v492
    %v685 = vpack.c.bf16 %v507, %v502
    %v686 = vpack.c.bf16 %v517, %v512
    %v687 = vpack.c.bf16 %v527, %v522
    %v688 = vpack.c.bf16 %v537, %v532
    %v689 = vpack.c.bf16 %v547, %v542
    %v690 = vpack.c.bf16 %v557, %v552
    %v691 = vpack.c.bf16 %v567, %v562
    %v692 = vpack.c.bf16 %v577, %v572
    %v693 = vpack.c.bf16 %v587, %v582
    %v694 = vpack.c.bf16 %v597, %v592
    %v695 = vpack.c.bf16 %v607, %v602
    %v696 = vpack.c.bf16 %v617, %v612
    %v697 = vpack.c.bf16 %v627, %v622
    %v698 = vpack.c.bf16 %v637, %v632
    %v699 = vpack.c.bf16 %v647, %v642
    %v700 = vpack.c.bf16 %v657, %v652
    %v701 = vpack.c.bf16 %v667, %v662
    %v734 = vunpack.c.l.b16 %v670
    %v735 = vunpack.c.h.b16 %v670
    %v736 = vunpack.c.l.b16 %v671
    %v737 = vunpack.c.h.b16 %v671
    %v738 = vunpack.c.l.b16 %v672
    %v739 = vunpack.c.h.b16 %v672
    %v740 = vunpack.c.l.b16 %v673
    %v741 = vunpack.c.h.b16 %v673
    %v742 = vunpack.c.l.b16 %v674
    %v743 = vunpack.c.h.b16 %v674
    %v744 = vunpack.c.l.b16 %v675
    %v745 = vunpack.c.h.b16 %v675
    %v746 = vunpack.c.l.b16 %v676
    %v747 = vunpack.c.h.b16 %v676
    %v748 = vunpack.c.l.b16 %v677
    %v749 = vunpack.c.h.b16 %v677
    %v750 = vunpack.c.l.b16 %v678
    %v751 = vunpack.c.h.b16 %v678
    %v752 = vunpack.c.l.b16 %v679
    %v753 = vunpack.c.h.b16 %v679
    %v754 = vunpack.c.l.b16 %v680
    %v755 = vunpack.c.h.b16 %v680
    %v756 = vunpack.c.l.b16 %v681
    %v757 = vunpack.c.h.b16 %v681
    %v758 = vunpack.c.l.b16 %v682
    %v759 = vunpack.c.h.b16 %v682
    %v760 = vunpack.c.l.b16 %v683
    %v761 = vunpack.c.h.b16 %v683
    %v762 = vunpack.c.l.b16 %v684
    %v763 = vunpack.c.h.b16 %v684
    %v764 = vunpack.c.l.b16 %v685
    %v765 = vunpack.c.h.b16 %v685
    %v766 = vunpack.c.l.b16 %v686
    %v767 = vunpack.c.h.b16 %v686
    %v768 = vunpack.c.l.b16 %v687
    %v769 = vunpack.c.h.b16 %v687
    %v770 = vunpack.c.l.b16 %v688
    %v771 = vunpack.c.h.b16 %v688
    %v772 = vunpack.c.l.b16 %v689
    %v773 = vunpack.c.h.b16 %v689
    %v774 = vunpack.c.l.b16 %v690
    %v775 = vunpack.c.h.b16 %v690
    %v776 = vunpack.c.l.b16 %v691
    %v777 = vunpack.c.h.b16 %v691
    %v778 = vunpack.c.l.b16 %v692
    %v779 = vunpack.c.h.b16 %v692
    %v780 = vunpack.c.l.b16 %v693
    %v781 = vunpack.c.h.b16 %v693
    %v782 = vunpack.c.l.b16 %v694
    %v783 = vunpack.c.h.b16 %v694
    %v784 = vunpack.c.l.b16 %v695
    %v785 = vunpack.c.h.b16 %v695
    %v786 = vunpack.c.l.b16 %v696
    %v787 = vunpack.c.h.b16 %v696
    %v788 = vunpack.c.l.b16 %v697
    %v789 = vunpack.c.h.b16 %v697
    %v790 = vunpack.c.l.b16 %v698
    %v791 = vunpack.c.h.b16 %v698
    %v792 = vunpack.c.l.b16 %v699
    %v793 = vunpack.c.h.b16 %v699
    %v794 = vunpack.c.l.b16 %v700
    %v795 = vunpack.c.h.b16 %v700
    %v796 = vunpack.c.l.b16 %v701
    %v797 = vunpack.c.h.b16 %v701
    %v798 = vpack.c.b16 %v734, %v734
    %v799 = vpack.c.b16 %v735, %v735
    %v800 = vpack.c.b16 %v736, %v736
    %v801 = vpack.c.b16 %v737, %v737
    %v802 = vpack.c.b16 %v738, %v738
    %v803 = vpack.c.b16 %v739, %v739
    %v804 = vpack.c.b16 %v740, %v740
    %v805 = vpack.c.b16 %v741, %v741
    %v806 = vpack.c.b16 %v742, %v742
    %v807 = vpack.c.b16 %v743, %v743
    %v808 = vpack.c.b16 %v744, %v744
    %v809 = vpack.c.b16 %v745, %v745
    %v810 = vpack.c.b16 %v746, %v746
    %v811 = vpack.c.b16 %v747, %v747
    %v812 = vpack.c.b16 %v748, %v748
    %v813 = vpack.c.b16 %v749, %v749
    %v814 = vpack.c.b16 %v750, %v750
    %v815 = vpack.c.b16 %v751, %v751
    %v816 = vpack.c.b16 %v752, %v752
    %v817 = vpack.c.b16 %v753, %v753
    %v818 = vpack.c.b16 %v754, %v754
    %v819 = vpack.c.b16 %v755, %v755
    %v820 = vpack.c.b16 %v756, %v756
    %v821 = vpack.c.b16 %v757, %v757
    %v822 = vpack.c.b16 %v758, %v758
    %v823 = vpack.c.b16 %v759, %v759
    %v824 = vpack.c.b16 %v760, %v760
    %v825 = vpack.c.b16 %v761, %v761
    %v826 = vpack.c.b16 %v762, %v762
    %v827 = vpack.c.b16 %v763, %v763
    %v828 = vpack.c.b16 %v764, %v764
    %v829 = vpack.c.b16 %v765, %v765
    %v830 = vpack.c.b16 %v766, %v766
    %v831 = vpack.c.b16 %v767, %v767
    %v832 = vpack.c.b16 %v768, %v768
    %v833 = vpack.c.b16 %v769, %v769
    %v834 = vpack.c.b16 %v770, %v770
    %v835 = vpack.c.b16 %v771, %v771
    %v836 = vpack.c.b16 %v772, %v772
    %v837 = vpack.c.b16 %v773, %v773
    %v838 = vpack.c.b16 %v774, %v774
    %v839 = vpack.c.b16 %v775, %v775
    %v840 = vpack.c.b16 %v776, %v776
    %v841 = vpack.c.b16 %v777, %v777
    %v842 = vpack.c.b16 %v778, %v778
    %v843 = vpack.c.b16 %v779, %v779
    %v844 = vpack.c.b16 %v780, %v780
    %v845 = vpack.c.b16 %v781, %v781
    %v846 = vpack.c.b16 %v782, %v782
    %v847 = vpack.c.b16 %v783, %v783
    %v848 = vpack.c.b16 %v784, %v784
    %v849 = vpack.c.b16 %v785, %v785
    %v850 = vpack.c.b16 %v786, %v786
    %v851 = vpack.c.b16 %v787, %v787
    %v852 = vpack.c.b16 %v788, %v788
    %v853 = vpack.c.b16 %v789, %v789
    %v854 = vpack.c.b16 %v790, %v790
    %v855 = vpack.c.b16 %v791, %v791
    %v856 = vpack.c.b16 %v792, %v792
    %v857 = vpack.c.b16 %v793, %v793
    %v858 = vpack.c.b16 %v794, %v794
    %v859 = vpack.c.b16 %v795, %v795
    %v860 = vpack.c.b16 %v796, %v796
    %v861 = vpack.c.b16 %v797, %v797
    %926 = vst [vmem:[#allocation2] sm:$0xf] %v798
    %927 = vst [vmem:[#allocation2 + $0x4] sm:$0xf] %v799
    %928 = vst [vmem:[#allocation2 + $0x8] sm:$0xf] %v800
    %929 = vst [vmem:[#allocation2 + $0xc] sm:$0xf] %v801
    %930 = vst [vmem:[#allocation2 + $0x10] sm:$0xf] %v802
    %931 = vst [vmem:[#allocation2 + $0x14] sm:$0xf] %v803
    %932 = vst [vmem:[#allocation2 + $0x18] sm:$0xf] %v804
    %933 = vst [vmem:[#allocation2 + $0x1c] sm:$0xf] %v805
    %934 = vst [vmem:[#allocation2 + $0x20] sm:$0xf] %v806
    %935 = vst [vmem:[#allocation2 + $0x24] sm:$0xf] %v807
    %936 = vst [vmem:[#allocation2 + $0x28] sm:$0xf] %v808
    %937 = vst [vmem:[#allocation2 + $0x2c] sm:$0xf] %v809
    %938 = vst [vmem:[#allocation2 + $0x30] sm:$0xf] %v810
    %939 = vst [vmem:[#allocation2 + $0x34] sm:$0xf] %v811
    %940 = vst [vmem:[#allocation2 + $0x38] sm:$0xf] %v812
    %941 = vst [vmem:[#allocation2 + $0x3c] sm:$0xf] %v813
    %942 = vst [vmem:[#allocation2 + $0x40] sm:$0xf] %v814
    %943 = vst [vmem:[#allocation2 + $0x44] sm:$0xf] %v815
    %944 = vst [vmem:[#allocation2 + $0x48] sm:$0xf] %v816
    %945 = vst [vmem:[#allocation2 + $0x4c] sm:$0xf] %v817
    %946 = vst [vmem:[#allocation2 + $0x50] sm:$0xf] %v818
    %947 = vst [vmem:[#allocation2 + $0x54] sm:$0xf] %v819
    %948 = vst [vmem:[#allocation2 + $0x58] sm:$0xf] %v820
    %949 = vst [vmem:[#allocation2 + $0x5c] sm:$0xf] %v821
    %950 = vst [vmem:[#allocation2 + $0x60] sm:$0xf] %v822
    %951 = vst [vmem:[#allocation2 + $0x64] sm:$0xf] %v823
    %952 = vst [vmem:[#allocation2 + $0x68] sm:$0xf] %v824
    %953 = vst [vmem:[#allocation2 + $0x6c] sm:$0xf] %v825
    %954 = vst [vmem:[#allocation2 + $0x70] sm:$0xf] %v826
    %955 = vst [vmem:[#allocation2 + $0x74] sm:$0xf] %v827
    %956 = vst [vmem:[#allocation2 + $0x78] sm:$0xf] %v828
    %957 = vst [vmem:[#allocation2 + $0x7c] sm:$0xf] %v829
    %958 = vst [vmem:[#allocation2 + $0x80] sm:$0xf] %v830
    %959 = vst [vmem:[#allocation2 + $0x84] sm:$0xf] %v831
    %960 = vst [vmem:[#allocation2 + $0x88] sm:$0xf] %v832
    %961 = vst [vmem:[#allocation2 + $0x8c] sm:$0xf] %v833
    %962 = vst [vmem:[#allocation2 + $0x90] sm:$0xf] %v834
    %963 = vst [vmem:[#allocation2 + $0x94] sm:$0xf] %v835
    %964 = vst [vmem:[#allocation2 + $0x98] sm:$0xf] %v836
    %965 = vst [vmem:[#allocation2 + $0x9c] sm:$0xf] %v837
    %966 = vst [vmem:[#allocation2 + $0xa0] sm:$0xf] %v838
    %967 = vst [vmem:[#allocation2 + $0xa4] sm:$0xf] %v839
    %968 = vst [vmem:[#allocation2 + $0xa8] sm:$0xf] %v840
    %969 = vst [vmem:[#allocation2 + $0xac] sm:$0xf] %v841
    %970 = vst [vmem:[#allocation2 + $0xb0] sm:$0xf] %v842
    %971 = vst [vmem:[#allocation2 + $0xb4] sm:$0xf] %v843
    %972 = vst [vmem:[#allocation2 + $0xb8] sm:$0xf] %v844
    %973 = vst [vmem:[#allocation2 + $0xbc] sm:$0xf] %v845
    %974 = vst [vmem:[#allocation2 + $0xc0] sm:$0xf] %v846
    %975 = vst [vmem:[#allocation2 + $0xc4] sm:$0xf] %v847
    %976 = vst [vmem:[#allocation2 + $0xc8] sm:$0xf] %v848
    %977 = vst [vmem:[#allocation2 + $0xcc] sm:$0xf] %v849
    %978 = vst [vmem:[#allocation2 + $0xd0] sm:$0xf] %v850
    %979 = vst [vmem:[#allocation2 + $0xd4] sm:$0xf] %v851
    %980 = vst [vmem:[#allocation2 + $0xd8] sm:$0xf] %v852
    %981 = vst [vmem:[#allocation2 + $0xdc] sm:$0xf] %v853
    %982 = vst [vmem:[#allocation2 + $0xe0] sm:$0xf] %v854
    %983 = vst [vmem:[#allocation2 + $0xe4] sm:$0xf] %v855
    %984 = vst [vmem:[#allocation2 + $0xe8] sm:$0xf] %v856
    %985 = vst [vmem:[#allocation2 + $0xec] sm:$0xf] %v857
    %986 = vst [vmem:[#allocation2 + $0xf0] sm:$0xf] %v858
    %987 = vst [vmem:[#allocation2 + $0xf4] sm:$0xf] %v859
    %988 = vst [vmem:[#allocation2 + $0xf8] sm:$0xf] %v860
    %989 = vst [vmem:[#allocation2 + $0xfc] sm:$0xf] %v861
    // Predicated region
    $region14: #{tpu_custom_call.1} parent=1 // pred_check
      _
    $region15: #{tpu_custom_call.1} parent=1 // pred_check_branch
      %991 = sbr.rel (0) target = $region17
    $region16: #{tpu_custom_call.1} parent=1 // pred_region
      %s993 = ssub.s32 4096, 4096
      %994 = vsyncadd [#allocation3], %s993
      %s995 = sshll.u32 [#allocation2], 4
      %s996 = int_to_ptr.vmem [resolvable:$true] %s995
      %1001 = dma.vmem_to_hbm [thread:$0]  %s996, 4096, %s3, [#allocation3], 64, 64, 4
    $region17: #{tpu_custom_call.1} parent=1 // pred_fallthru
      _
    // Predicated region
    $region18: #{tpu_custom_call.1} parent=1 // pred_check
      _
    $region19: #{tpu_custom_call.1} parent=1 // pred_check_branch
      %1003 = sbr.rel (0) target = $region21
    $region20: #{tpu_custom_call.1} parent=1 // pred_region
      %1004 = dma.done [#allocation3], 4096
    $region21: #{tpu_custom_call.1} parent=1 // pred_fallthru
      _
    %1005 = vsyncpa [#allocation3], 1

</llo_original>
